<compile_context>
chip_gen: v7x
topology: tpu7x:2x2x1
jax: 0.10.0
libtpu: 0.0.40
codegen_flags: <defaults>
</compile_context>

<pallas_src>
import math

import jax
import jax.numpy as jnp
from jax.experimental import pallas as pl
from jax.experimental.pallas import tpu as pltpu


def _round_up(x: int, m: int) -> int:
    return ((x + m - 1) // m) * m


def _build_fixed_table(c_in: int, d_model: int) -> jnp.ndarray:
    """Deterministic sinusoidal table, identical to the PyTorch __init__."""
    position = jnp.arange(c_in, dtype=jnp.float32)[:, None]            # (c_in, 1)
    div_term = jnp.exp(
        jnp.arange(0, d_model, 2, dtype=jnp.float32)
        * -(math.log(10000.0) / d_model)
    )                                                                  # (d_model//2,)
    angles = position * div_term                                       # (c_in, d_model//2)
    w = jnp.zeros((c_in, d_model), dtype=jnp.float32)
    w = w.at[:, 0::2].set(jnp.sin(angles))
    w = w.at[:, 1::2].set(jnp.cos(angles))
    return w


def _pack_factor(d_model: int) -> int:
    """Tokens packed per output row so the row width is a multiple of 128."""
    if d_model % 128 == 0:
        return 1
    if 128 % d_model == 0:
        return 128 // d_model
    return 1  # fallback: columns get zero-padded to 128 in the wrapper


def _packed_embedding_kernel(idx_ref, table_ref, out_ref):
    # idx_ref:   (TR, P)               int32 — indices pre-offset by slot*c_in
    # table_ref: (P*c_in, DP_pad)      f32/bf16 — block-diagonal packed table
    # out_ref:   (TR, DP_pad)          f32   — lane-dense output rows
    idx = idx_ref[...]
    tr, p = idx.shape
    pk = table_ref.shape[0]
    col = jax.lax.broadcasted_iota(jnp.int32, (tr, pk), dimension=1)
    # Slot offsets (added in the wrapper) make the P hit-columns disjoint, so
    # logical_or is exact; one cast at the end instead of P casts + adds.
    hit = col == idx[:, 0:1]
    for j in range(1, p):                      # P is a small static constant
        hit = jnp.logical_or(hit, col == idx[:, j:j + 1])
    mh = hit.astype(table_ref.dtype)
    out_ref[...] = jnp.dot(mh, table_ref[...],
                           preferred_element_type=jnp.float32)


def fixed_embedding(x: jnp.ndarray, table: jnp.ndarray, *,
                    min_kernel_tokens: int = 4096,
                    force_kernel: bool = False,
                    mxu_dtype=jnp.float32) -> jnp.ndarray:
    """x: (B, L) int indices; table: (c_in, d_model) f32 -> (B, L, d_model)."""
    b, l = x.shape
    c_in, d_model = table.shape
    n = b * l

    # Small-input bypass: a few-KiB gather is faster as a plain XLA op than a
    # pallas_call launch + padding.
    if n < min_kernel_tokens and not force_kernel:
        return table.astype(jnp.float32)[x]

    p = _pack_factor(d_model)
    dp = p * d_model                   # logical packed row width
    dp_pad = _round_up(dp, 128)        # lane-dense stored row width
    cp = p * c_in                      # packed table rows

    # --- pack P tokens per row --------------------------------------------
    r = -(-n // p)                                     # ceil(n / p)

    # --- tile rows by VMEM budget (per core) -------------------------------
    # Per TR row: 2 output buffers (dp_pad*4 B) + 2 lane-padded int32 index
    # buffers (128*4 B each, regardless of P).  Keep streaming buffers within
    # ~14 MiB per core so v7x (64 MiB physical / 32 MiB scoped, 2 cores) and
    # v5e (16 MiB default scoped -> raised below) both double-buffer cleanly.
    budget_bytes = 14 * 1024 * 1024
    bytes_per_row = 2 * dp_pad * 4 + 2 * 128 * 4
    tr_vmem = max(8, (budget_bytes // bytes_per_row) // 8 * 8)
    tr_half = _round_up(-(-r // 2), 8)     # keep >= 2 grid steps for v7x 2-TC
    tr = max(8, min(tr_vmem, tr_half, 8192))
    r_pad = _round_up(r, tr)
    n_pad = r_pad * p

    idx_flat = jnp.pad(x.reshape(-1).astype(jnp.int32), (0, n_pad - n))
    # Offset each token slot j into block j of the block-diagonal table.
    idx_packed = idx_flat.reshape(r_pad, p) + (
        jnp.arange(p, dtype=jnp.int32) * c_in)[None, :]

    # --- block-diagonal packed table (tiny, built at trace time) -----------
    table_c = table.astype(mxu_dtype)
    table_packed = jnp.zeros((cp, dp_pad), dtype=mxu_dtype)
    for j in range(p):
        table_packed = table_packed.at[
            j * c_in:(j + 1) * c_in, j * d_model:(j + 1) * d_model
        ].set(table_c)

    grid = (r_pad // tr,)
    out_packed = pl.pallas_call(
        _packed_embedding_kernel,
        out_shape=jax.ShapeDtypeStruct((r_pad, dp_pad), jnp.float32),
        grid_spec=pltpu.PrefetchScalarGridSpec(
            num_scalar_prefetch=0,
            grid=grid,
            in_specs=[
                # Index tiles stream with the grid (double-buffered).
                pl.BlockSpec((tr, p), lambda i: (i, 0)),
                # Packed table: same block every step -> DMA'd once, resident.
                pl.BlockSpec((cp, dp_pad), lambda i: (0, 0)),
            ],
            out_specs=pl.BlockSpec((tr, dp_pad), lambda i: (i, 0)),
        ),
        compiler_params=pltpu.CompilerParams(
            # Embarrassingly parallel over packed rows: lets v7x shard the
            # grid across both TensorCores; harmless on single-TC v5e/v6e.
            dimension_semantics=("parallel",),
            # Above v5e's 16 MiB default scoped VMEM, within v7x's 32 MiB.
            vmem_limit_bytes=32 * 1024 * 1024,
        ),
        cost_estimate=pl.CostEstimate(
            flops=2 * r_pad * cp * dp_pad,
            transcendentals=0,
            bytes_accessed=(r_pad * p * 4            # indices
                            + cp * dp_pad * 4        # table (once)
                            + r_pad * dp_pad * 4),   # output writeback
        ),
    )(idx_packed, table_packed)

    # Drop column padding (no-op when dp_pad == dp), unpack rows, drop row
    # padding, restore (B, L, d_model).
    out = out_packed[:, :dp].reshape(n_pad, d_model)[:n]
    return out.reshape(b, l, d_model)


if __name__ == "__main__":
    # Small shapes: "minute/hour"-style categorical embedding.
    c_in = 16      # vocabulary size
    d_model = 32   # embedding dimension

    key = jax.random.PRNGKey(0)
    k1, k2 = jax.random.split(key)
    table = _build_fixed_table(c_in, d_model)

    # --- tiny case (batch=2, seq=8): exercise the kernel path explicitly ---
    x_small = jax.random.randint(k1, (2, 8), 0, c_in, dtype=jnp.int32)
    out_small = jax.block_until_ready(
        fixed_embedding(x_small, table, force_kernel=True))
    ref_small = table[x_small]
    assert out_small.shape == (2, 8, d_model)
    assert jnp.allclose(out_small, ref_small, atol=1e-6), "kernel mismatch (small)"

    # Default path for tiny inputs bypasses the kernel (plain XLA gather).
    out_bypass = jax.block_until_ready(fixed_embedding(x_small, table))
    assert jnp.allclose(out_bypass, ref_small, atol=1e-6), "bypass mismatch"

    # --- medium case (batch=4, seq=512): exercises a 2-step parallel grid --
    x_med = jax.random.randint(k2, (4, 512), 0, c_in, dtype=jnp.int32)
    out_med = jax.block_until_ready(
        fixed_embedding(x_med, table, force_kernel=True))
    ref_med = table[x_med]
    assert out_med.shape == (4, 512, d_model)
    assert jnp.allclose(out_med, ref_med, atol=1e-6), "kernel mismatch (medium)"

    print("KERNEL_OK")
</pallas_src>

<mosaic_0001>
module attributes {stable_mosaic.version = 11 : i64} {
  func.func @_packed_embedding_kernel(%arg0: i32, %arg1: memref<8x4xi32, #tpu.memory_space<vmem>>, %arg2: memref<64x128xf32, #tpu.memory_space<vmem>>, %arg3: memref<8x128xf32, #tpu.memory_space<vmem>>) attributes {dimension_semantics = [#tpu.dimension_semantics<parallel>], iteration_bounds = array<i64: 1>, scalar_prefetch = 0 : i64, scratch_operands = 0 : i64, tpu.core_type = #tpu.core_type<tc>, window_params = [{transform_indices = @transform_0, window_bounds = array<i64: 8, 4>}, {pipeline_mode = #tpu.pipeline_mode<synchronous>, transform_indices = @transform_1, window_bounds = array<i64: 64, 128>}, {transform_indices = @transform_2, window_bounds = array<i64: 8, 128>}]} {
    %c0 = arith.constant 0 : index
    %c0_0 = arith.constant 0 : index
    %0 = vector.load %arg1[%c0, %c0_0] : memref<8x4xi32, #tpu.memory_space<vmem>>, vector<8x4xi32>
    %1 = tpu.iota {dimensions = array<i32: 1>} : vector<8x64xi32>
    %2 = vector.extract_strided_slice %0 {offsets = [0, 0], sizes = [8, 1], strides = [1, 1]} : vector<8x4xi32> to vector<8x1xi32>
    %3 = vector.broadcast %2 : vector<8x1xi32> to vector<8x64xi32>
    %4 = arith.cmpi eq, %1, %3 : vector<8x64xi32>
    %5 = vector.extract_strided_slice %0 {offsets = [0, 1], sizes = [8, 1], strides = [1, 1]} : vector<8x4xi32> to vector<8x1xi32>
    %6 = vector.broadcast %5 : vector<8x1xi32> to vector<8x64xi32>
    %7 = arith.cmpi eq, %1, %6 : vector<8x64xi32>
    %8 = arith.ori %4, %7 : vector<8x64xi1>
    %9 = vector.extract_strided_slice %0 {offsets = [0, 2], sizes = [8, 1], strides = [1, 1]} : vector<8x4xi32> to vector<8x1xi32>
    %10 = vector.broadcast %9 : vector<8x1xi32> to vector<8x64xi32>
    %11 = arith.cmpi eq, %1, %10 : vector<8x64xi32>
    %12 = arith.ori %8, %11 : vector<8x64xi1>
    %13 = vector.extract_strided_slice %0 {offsets = [0, 3], sizes = [8, 1], strides = [1, 1]} : vector<8x4xi32> to vector<8x1xi32>
    %14 = vector.broadcast %13 : vector<8x1xi32> to vector<8x64xi32>
    %15 = arith.cmpi eq, %1, %14 : vector<8x64xi32>
    %16 = arith.ori %12, %15 : vector<8x64xi1>
    %17 = arith.extui %16 : vector<8x64xi1> to vector<8x64xi32>
    %18 = arith.sitofp %17 : vector<8x64xi32> to vector<8x64xf32>
    %c0_1 = arith.constant 0 : index
    %c0_2 = arith.constant 0 : index
    %19 = vector.load %arg2[%c0_1, %c0_2] : memref<64x128xf32, #tpu.memory_space<vmem>>, vector<64x128xf32>
    %cst = arith.constant dense<0.000000e+00> : vector<8x128xf32>
    %20 = tpu.matmul %18, %19, %cst {dimension_numbers = #tpu.dot_dimension_numbers<[1], [0], [0], [1], [0, 0, 1, 1], [], []>} : vector<8x64xf32>, vector<64x128xf32>, vector<8x128xf32> -> vector<8x128xf32>
    %c0_3 = arith.constant 0 : index
    %c0_4 = arith.constant 0 : index
    %21 = vector.load %arg3[%c0_3, %c0_4] : memref<8x128xf32, #tpu.memory_space<vmem>>, vector<8x128xf32>
    tpu.vector_store %arg3[%c0_3, %c0_4], %20 {strides = array<i32>} : memref<8x128xf32, #tpu.memory_space<vmem>>, vector<8x128xf32>,
    return
  }
  func.func @transform_0(%arg0: i32) -> (i32, i32) {
    %c0_i32 = arith.constant 0 : i32
    %c0_i32_0 = arith.constant 0 : i32
    return %arg0, %c0_i32 : i32, i32
  }
  func.func @transform_1(%arg0: i32) -> (i32, i32) {
    %c0_i32 = arith.constant 0 : i32
    %c0_i32_0 = arith.constant 0 : i32
    %c0_i32_1 = arith.constant 0 : i32
    return %c0_i32, %c0_i32_0 : i32, i32
  }
  func.func @transform_2(%arg0: i32) -> (i32, i32) {
    %c0_i32 = arith.constant 0 : i32
    %c0_i32_0 = arith.constant 0 : i32
    return %arg0, %c0_i32 : i32, i32
  }
}

</mosaic_0001>

<llo_original>
// kernel: tpu_custom_call.1
$region0: #{tpu_custom_call.1}
  #allocation0 [shape = 'u32[]', space=smem, size = 0x4, offset = 0x4, fixed_abs, tag = 'smem constant byte address 0x4 - core index']
  #allocation1 [shape = 'u32[144,128]{1,0:T(1,128)}', space=vmem, size = 0x12000, scoped, tag = 'internal scratch']
  %s0 = inlined_call_operand.vmem [shape: s32[8,4], index: 0, kind: input, shape index: {}]
  %s1 = inlined_call_operand.hbm [shape: f32[64,128], index: 1, kind: input, shape index: {}]
  %s2 = inlined_call_operand.hbm [shape: f32[8,128], index: 2, kind: output, shape index: {}]
  %s3 = sld [smem:[#allocation0]]
  $region22: #{tpu_custom_call.1} parent=0
    _
  %s5 = ssub.s32 1, %s3
  %s6 = scalar_select 0, %s5, %s3
  $region1: #{tpu_custom_call.1} parent=0
    #allocation2 [shape = 'u8[32768]{0}', space=vmem, size = 0x8000, scoped, tag = 'input window, operand 1, single buffered']
    #allocation3 [shape = 's32[1]{0}', space=sflag, size = 0x4, scoped, tag = 'scoped memory for tpu_custom_call.1']
    #allocation4 [shape = 's32[1]{0}', space=sflag, size = 0x4, scoped, tag = 'scoped memory for tpu_custom_call.1']
    #allocation5 [shape = 'u8[4096]{0}', space=vmem, size = 0x1000, scoped, tag = 'output window, operand 0, single buffered']
    %7 = vsyncpa [#allocation3], 0
    %8 = vsyncpa [#allocation4], 0
    // Predicated region
    $region2: #{tpu_custom_call.1} parent=1 // pred_check
      _
    $region3: #{tpu_custom_call.1} parent=1 // pred_check_branch
      %10 = sbr.rel (0) target = $region5
    $region4: #{tpu_custom_call.1} parent=1 // pred_region
      _
    $region5: #{tpu_custom_call.1} parent=1 // pred_fallthru
      _
    // Predicated region
    $region6: #{tpu_custom_call.1} parent=1 // pred_check
      _
    $region7: #{tpu_custom_call.1} parent=1 // pred_check_branch
      %12 = sbr.rel (0) target = $region9
    $region8: #{tpu_custom_call.1} parent=1 // pred_region
      %s14 = ssub.s32 1024, 1024
      %15 = vsyncadd [#allocation3], %s14
      %s16 = sshll.u32 [#allocation2], 4
      %s17 = int_to_ptr.vmem [resolvable:$true] %s16
      %22 = dma.hbm_to_vmem [thread:$0]  %s1, 1024, %s17, [#allocation3], 128, 128, 8
    $region9: #{tpu_custom_call.1} parent=1 // pred_fallthru
      _
    // Predicated region
    $region10: #{tpu_custom_call.1} parent=1 // pred_check
      _
    $region11: #{tpu_custom_call.1} parent=1 // pred_check_branch
      %24 = sbr.rel (0) target = $region13
    $region12: #{tpu_custom_call.1} parent=1 // pred_region
      %25 = dma.done [#allocation3], 1024
    $region13: #{tpu_custom_call.1} parent=1 // pred_fallthru
      _
    %v26 = vld [vmem:[%s0] sm:$0xff]
    %v27 = vlaneseq
    %v28 = vand.u32 %v27, 127
    %29 = vset.pattern.permute.xlu0 0
    %30 = vperm.xlu0 %29, %v26
    %v31 = vpop.permute.xlu0 %30
    %vm32 = vcmp.eq.s32.totalorder %v28, %v31
    %33 = vset.pattern.permute.xlu0 1
    %34 = vperm.xlu0 %33, %v26
    %v35 = vpop.permute.xlu0 %34
    %vm36 = vcmp.eq.s32.totalorder %v28, %v35
    %vm37 = vmor %vm32, %vm36
    %38 = vset.pattern.permute.xlu0 2
    %39 = vperm.xlu0 %38, %v26
    %v40 = vpop.permute.xlu0 %39
    %vm41 = vcmp.eq.s32.totalorder %v28, %v40
    %vm42 = vmor %vm37, %vm41
    %43 = vset.pattern.permute.xlu0 3
    %44 = vperm.xlu0 %43, %v26
    %v45 = vpop.permute.xlu0 %44
    %vm46 = vcmp.eq.s32.totalorder %v28, %v45
    %vm47 = vmor %vm42, %vm46
    %v48 = vsel %vm47, 1, 0
    %v49 = vcvt.s32.f32 %v48
    %v50 = vld [vmem:[#allocation2] sm:$0xff]
    %v51 = vld [vmem:[#allocation2 + $0x8] sm:$0xff]
    %v52 = vld [vmem:[#allocation2 + $0x10] sm:$0xff]
    %v53 = vld [vmem:[#allocation2 + $0x18] sm:$0xff]
    %v54 = vld [vmem:[#allocation2 + $0x20] sm:$0xff]
    %v55 = vld [vmem:[#allocation2 + $0x28] sm:$0xff]
    %v56 = vld [vmem:[#allocation2 + $0x30] sm:$0xff]
    %v57 = vld [vmem:[#allocation2 + $0x38] sm:$0xff]
    %vm58 = vcmask 523264
    %v60 = vsel %vm58, %v49, 0
    %62 = vmatprep.subr.mxu0 0.0
    %63 = vmatpush1.msra.mxu0 %v50
    %64 = vmatprep.subr.mxu0 0.0
    %65 = vmatpush1.msra.mxu0 %v51
    %66 = vmatprep.subr.mxu0 0.0
    %67 = vmatpush1.msra.mxu0 %v52
    %68 = vmatprep.subr.mxu0 0.0
    %69 = vmatpush1.msra.mxu0 %v53
    %70 = vmatprep.subr.mxu0 0.0
    %71 = vmatpush1.msra.mxu0 %v54
    %72 = vmatprep.subr.mxu0 0.0
    %73 = vmatpush1.msra.mxu0 %v55
    %74 = vmatprep.subr.mxu0 0.0
    %75 = vmatpush1.msra.mxu0 %v56
    %76 = vmatprep.subr.mxu0 0.0
    %77 = vmatpush1.msra.mxu0 %v57
    %78 = vmatprep.subr.mxu0 0.0
    %79 = vmatpush1.msra.mxu0 0.0
    %80 = vmatprep.subr.mxu0 0.0
    %81 = vmatpush1.msra.mxu0 0.0
    %82 = vmatprep.subr.mxu0 0.0
    %83 = vmatpush1.msra.mxu0 0.0
    %84 = vmatprep.subr.mxu0 0.0
    %85 = vmatpush1.msra.mxu0 0.0
    %86 = vmatprep.subr.mxu0 0.0
    %87 = vmatpush1.msra.mxu0 0.0
    %88 = vmatprep.subr.mxu0 0.0
    %89 = vmatpush1.msra.mxu0 0.0
    %90 = vmatprep.subr.mxu0 0.0
    %91 = vmatpush1.msra.mxu0 0.0
    %92 = vmatprep.subr.mxu0 0.0
    %93 = vmatpush1.msra.mxu0 0.0
    %94 = vmatprep.subr.mxu0 0.0
    %95 = vmatpush1.msra.mxu0 0.0
    %96 = vmatprep.subr.mxu0 0.0
    %97 = vmatpush1.msra.mxu0 0.0
    %98 = vmatprep.subr.mxu0 0.0
    %99 = vmatpush1.msra.mxu0 0.0
    %100 = vmatprep.subr.mxu0 0.0
    %101 = vmatpush1.msra.mxu0 0.0
    %102 = vmatprep.subr.mxu0 0.0
    %103 = vmatpush1.msra.mxu0 0.0
    %104 = vmatprep.subr.mxu0 0.0
    %105 = vmatpush1.msra.mxu0 0.0
    %106 = vmatprep.subr.mxu0 0.0
    %107 = vmatpush1.msra.mxu0 0.0
    %108 = vmatprep.subr.mxu0 0.0
    %109 = vmatpush1.msra.mxu0 0.0
    %110 = vmatprep.subr.mxu0 0.0
    %111 = vmatpush1.msra.mxu0 0.0
    %112 = vmatprep.subr.mxu0 0.0
    %113 = vmatpush1.msra.mxu0 0.0
    %114 = vmatprep.subr.mxu0 0.0
    %115 = vmatpush1.msra.mxu0 0.0
    %116 = vmatprep.subr.mxu0 0.0
    %117 = vmatpush1.msra.mxu0 0.0
    %118 = vmatprep.subr.mxu0 0.0
    %119 = vmatpush1.msra.mxu0 0.0
    %120 = vmatprep.subr.mxu0 0.0
    %121 = vmatpush1.msra.mxu0 0.0
    %122 = vmatprep.subr.mxu0 0.0
    %123 = vmatpush1.msra.mxu0 0.0
    %124 = vmatprep.subr.mxu0 0.0
    %125 = vmatpush1.msra.mxu0 0.0
    %126 = vmatprep.mubr.f32.mxu0 0.0
    %127 = vmatmul.mubr.f32.gmra.mrb[0].mxu0 %v60
    %v128 = vpop.f32.mrb[0].mxu0
    %v129 = vadd.f32 0.0, %v128
    %v130 = vpop.f32.mrb[0].mxu0
    %131 = vdwg.mxu0
    %132 = vst [vmem:[#allocation5] sm:$0xff] %v129
    // Predicated region
    $region14: #{tpu_custom_call.1} parent=1 // pred_check
      _
    $region15: #{tpu_custom_call.1} parent=1 // pred_check_branch
      %134 = sbr.rel (0) target = $region17
    $region16: #{tpu_custom_call.1} parent=1 // pred_region
      %s136 = ssub.s32 128, 128
      %137 = vsyncadd [#allocation4], %s136
      %s139 = sshll.u32 [#allocation5], 4
      %s140 = int_to_ptr.vmem [resolvable:$true] %s139
      %142 = dma.vmem_to_hbm [thread:$0]  %s140, 128, %s2, [#allocation4]
    $region17: #{tpu_custom_call.1} parent=1 // pred_fallthru
      _
    // Predicated region
    $region18: #{tpu_custom_call.1} parent=1 // pred_check
      _
    $region19: #{tpu_custom_call.1} parent=1 // pred_check_branch
      %144 = sbr.rel (0) target = $region21
    $region20: #{tpu_custom_call.1} parent=1 // pred_region
      %145 = dma.done [#allocation4], 128
    $region21: #{tpu_custom_call.1} parent=1 // pred_fallthru
      _
    %146 = vsyncpa [#allocation3], 1
    %147 = vsyncpa [#allocation4], 1

</llo_original>
